<compile_context>
chip_gen: v7x
topology: tpu7x:2x2x1
jax: 0.10.0
libtpu: 0.0.40
codegen_flags: <defaults>
</compile_context>

<pallas_src>
import functools

import jax
import jax.numpy as jnp
from jax import lax
from jax.experimental import pallas as pl
from jax.experimental.pallas import tpu as pltpu


def _avg3x3_flat_kernel(w_ref, b_ref, x_ref, o_ref, s_ref, *, H, W, rows_per_chunk):
    # w_ref : (3, 3) f32 in SMEM  (uniform conv weight, all 1/9)
    # b_ref : (1,)  f32 in SMEM  (conv bias, zero)
    # x_ref : (B_blk, H*W) block of flattened images in VMEM
    # o_ref : (B_blk, H*W) output block in VMEM
    # s_ref : (R, H*W + 2*W) f32 VMEM scratch with a W-wide zero halo on both ends
    HW = H * W
    B_blk = x_ref.shape[0]
    R = rows_per_chunk

    w = w_ref[0, 0]  # uniform tap weight (1/9); module guarantees all taps equal
    b = b_ref[0]     # bias (0.0)

    # Zero the scratch once per grid step. Only the 2*W halo lanes must stay zero
    # (the interior is rewritten every chunk), but a full clear is cheap and is
    # megacore-safe (each core owns its own scratch instance).
    s_ref[...] = jnp.zeros_like(s_ref)

    # Column-boundary masks in flattened coordinates (hoisted out of the loop).
    col = lax.broadcasted_iota(jnp.int32, (1, HW), 1) % W
    has_l = col > 0          # a left neighbour exists inside the image row
    has_r = col < (W - 1)    # a right neighbour exists inside the image row

    n_chunks = pl.cdiv(B_blk, R)

    def body(c, carry):
        # Clamp the last chunk so we never index past the block (rows may overlap;
        # the recomputation is idempotent).
        r0 = jnp.minimum(c * R, B_blk - R)
        x = x_ref[pl.ds(r0, R), :].astype(jnp.float32)

        # ---- horizontal (within-row) 3-tap sum, zero padding at the W edges ----
        s_ref[:, pl.ds(W, HW)] = x
        left = s_ref[:, pl.ds(W - 1, HW)]    # x[p-1] (halo zero at p == 0)
        right = s_ref[:, pl.ds(W + 1, HW)]   # x[p+1] (halo zero at p == HW-1)
        h = x + jnp.where(has_l, left, 0.0) + jnp.where(has_r, right, 0.0)

        # ---- vertical (across-row) 3-tap sum: +-W in flat space == +-1 image row.
        # The W-wide zero halo supplies the zero padding at the H edges, no mask needed.
        s_ref[:, pl.ds(W, HW)] = h
        up = s_ref[:, pl.ds(0, HW)]          # h[p-W] (zeros for the first image row)
        down = s_ref[:, pl.ds(2 * W, HW)]    # h[p+W] (zeros for the last image row)
        v = h + up + down

        # Single multiply by the uniform tap weight, bias folded in.
        o_ref[pl.ds(r0, R), :] = (v * w + b).astype(o_ref.dtype)
        return carry

    lax.fori_loop(0, n_chunks, body, 0)


def _pick_batch_block(N, HW, target_bytes):
    """Rows (images) per grid step: ~target_bytes per input block, sublane aligned."""
    rows = max(1, target_bytes // (HW * 4))
    if rows >= N:
        return N                      # whole problem in one block (tiny inputs)
    rows = max(8, (rows // 8) * 8)    # keep the second-to-last block dim 8-aligned
    return min(rows, N)


def average_filter(x, weight, bias, *, target_block_bytes=2 << 20):
    """x: (N, 1, H, W) float32.  weight: (3, 3) f32 (uniform).  bias: (1,) f32."""
    N, C, H, W = x.shape
    assert C == 1
    HW = H * W

    # Free, layout-preserving reshape: each image becomes one flat, lane-dense row.
    x_flat = x.reshape(N, HW)

    B_blk = _pick_batch_block(N, HW, target_block_bytes)
    grid = (pl.cdiv(N, B_blk),)
    R = min(32, B_blk)  # rows per in-kernel chunk (keeps live values in vregs)

    kernel = functools.partial(_avg3x3_flat_kernel, H=H, W=W, rows_per_chunk=R)

    out_flat = pl.pallas_call(
        kernel,
        out_shape=jax.ShapeDtypeStruct((N, HW), x.dtype),
        grid_spec=pltpu.PrefetchScalarGridSpec(
            num_scalar_prefetch=0,
            grid=grid,
            in_specs=[
                pl.BlockSpec(memory_space=pltpu.SMEM),           # weight (3, 3)
                pl.BlockSpec(memory_space=pltpu.SMEM),           # bias (1,)
                pl.BlockSpec((B_blk, HW), lambda n: (n, 0)),     # flattened images
            ],
            out_specs=pl.BlockSpec((B_blk, HW), lambda n: (n, 0)),
            scratch_shapes=[pltpu.VMEM((R, HW + 2 * W), jnp.float32)],
        ),
        compiler_params=pltpu.CompilerParams(
            dimension_semantics=("parallel",),   # batch-block axis; feeds both v7x TCs
        ),
    )(weight, bias, x_flat)

    return out_flat.reshape(N, 1, H, W)


def _reference(x):
    """Pure-JAX reference: 3x3 mean with zero padding (same math as the PyTorch module)."""
    N, C, H, W = x.shape
    xp = jnp.pad(x, ((0, 0), (0, 0), (1, 1), (1, 1)))
    out = jnp.zeros_like(x)
    for di in range(3):
        for dj in range(3):
            out = out + xp[:, :, di:di + H, dj:dj + W] * (1.0 / 9.0)
    return out


if __name__ == "__main__":
    # Deterministic parameters matching AverageFilter.__init__:
    #   conv.weight = ones(1,1,3,3)/9  (stored here as (3,3)), conv.bias = zeros(1)
    weight = jnp.ones((3, 3), dtype=jnp.float32) / 9.0
    bias = jnp.zeros((1,), dtype=jnp.float32)

    # Small deterministic input consistent with Conv2d(in_channels=1): (N=2, C=1, H=16, W=16)
    key = jax.random.PRNGKey(0)
    x = jax.random.normal(key, (2, 1, 16, 16), dtype=jnp.float32)

    out = jax.block_until_ready(average_filter(x, weight, bias))
    assert out.shape == x.shape
    assert jnp.allclose(out, _reference(x), atol=1e-5, rtol=1e-5)

    # Extra coverage: multi-step grid with a partial tail block and the in-kernel chunk loop.
    x2 = jax.random.normal(jax.random.PRNGKey(1), (40, 1, 16, 16), dtype=jnp.float32)
    out2 = jax.block_until_ready(
        average_filter(x2, weight, bias, target_block_bytes=16 * 1024))
    assert jnp.allclose(out2, _reference(x2), atol=1e-5, rtol=1e-5)

    print("KERNEL_OK")
</pallas_src>

<mosaic_0001>
module attributes {stable_mosaic.version = 11 : i64} {
  func.func @_avg3x3_flat_kernel(%arg0: i32, %arg1: memref<3x3xf32, #tpu.memory_space<smem>>, %arg2: memref<1xf32, #tpu.memory_space<smem>>, %arg3: memref<2x256xf32, #tpu.memory_space<vmem>>, %arg4: memref<2x256xf32, #tpu.memory_space<vmem>>, %arg5: memref<2x288xf32, #tpu.memory_space<vmem>>) attributes {dimension_semantics = [#tpu.dimension_semantics<parallel>], iteration_bounds = array<i64: 1>, scalar_prefetch = 0 : i64, scratch_operands = 1 : i64, tpu.core_type = #tpu.core_type<tc>, window_params = [{transform_indices = @transform_0, window_bounds = array<i64: 3, 3>}, {transform_indices = @transform_1, window_bounds = array<i64: 1>}, {transform_indices = @transform_2, window_bounds = array<i64: 2, 256>}, {transform_indices = @transform_3, window_bounds = array<i64: 2, 256>}]} {
    %c0 = arith.constant 0 : index
    %c0_0 = arith.constant 0 : index
    %0 = memref.load %arg1[%c0, %c0_0] : memref<3x3xf32, #tpu.memory_space<smem>>
    %c0_1 = arith.constant 0 : index
    %1 = memref.load %arg2[%c0_1] : memref<1xf32, #tpu.memory_space<smem>>
    %cst = arith.constant 0.000000e+00 : f32
    %2 = vector.broadcast %cst : f32 to vector<2x288xf32>
    %c0_2 = arith.constant 0 : index
    %c0_3 = arith.constant 0 : index
    %3 = vector.load %arg5[%c0_2, %c0_3] : memref<2x288xf32, #tpu.memory_space<vmem>>, vector<2x288xf32>
    tpu.vector_store %arg5[%c0_2, %c0_3], %2 {strides = array<i32>} : memref<2x288xf32, #tpu.memory_space<vmem>>, vector<2x288xf32>,
    %4 = tpu.iota {dimensions = array<i32: 1>} : vector<1x256xi32>
    %c16_i32 = arith.constant 16 : i32
    %c0_i32 = arith.constant 0 : i32
    %5 = arith.cmpi eq, %c16_i32, %c0_i32 : i32
    %c1_i32 = arith.constant 1 : i32
    %6 = arith.select %5, %c1_i32, %c16_i32 : i32
    %7 = vector.broadcast %6 : i32 to vector<1x256xi32>
    %8 = arith.remsi %4, %7 : vector<1x256xi32>
    %c0_i32_4 = arith.constant 0 : i32
    %9 = vector.broadcast %c0_i32_4 : i32 to vector<1x256xi32>
    %10 = arith.cmpi ne, %8, %9 : vector<1x256xi32>
    %c0_i32_5 = arith.constant 0 : i32
    %11 = vector.broadcast %c0_i32_5 : i32 to vector<1x256xi32>
    %12 = arith.cmpi slt, %8, %11 : vector<1x256xi32>
    %c0_i32_6 = arith.constant 0 : i32
    %13 = arith.cmpi slt, %6, %c0_i32_6 : i32
    %14 = vector.broadcast %13 : i1 to vector<1x256xi1>
    %15 = vector.broadcast %14 : vector<1x256xi1> to vector<1x256xi1>
    %16 = arith.xori %12, %15 : vector<1x256xi1>
    %17 = arith.andi %16, %10 : vector<1x256xi1>
    %18 = vector.broadcast %6 : i32 to vector<1x256xi32>
    %19 = arith.addi %8, %18 : vector<1x256xi32>
    %20 = arith.select %17, %19, %8 : vector<1x256xi1>, vector<1x256xi32>
    %c0_i32_7 = arith.constant 0 : i32
    %21 = vector.broadcast %c0_i32_7 : i32 to vector<1x256xi32>
    %22 = arith.cmpi sgt, %20, %21 : vector<1x256xi32>
    %c15_i32 = arith.constant 15 : i32
    %23 = vector.broadcast %c15_i32 : i32 to vector<1x256xi32>
    %24 = arith.cmpi slt, %20, %23 : vector<1x256xi32>
    %c0_i32_8 = arith.constant 0 : i32
    %c2_i32 = arith.constant 2 : i32
    %25 = arith.muli %c0_i32_8, %c2_i32 : i32
    %c0_i32_9 = arith.constant 0 : i32
    %26 = arith.minsi %25, %c0_i32_9 : i32
    %27 = arith.index_cast %26 : i32 to index
    %c0_10 = arith.constant 0 : index
    %28 = vector.load %arg3[%27, %c0_10] : memref<2x256xf32, #tpu.memory_space<vmem>>, vector<2x256xf32>
    %c0_11 = arith.constant 0 : index
    %c16 = arith.constant 16 : index
    %29 = vector.load %arg5[%c0_11, %c16] : memref<2x288xf32, #tpu.memory_space<vmem>>, vector<2x256xf32>
    tpu.vector_store %arg5[%c0_11, %c16], %28 {strides = array<i32>} : memref<2x288xf32, #tpu.memory_space<vmem>>, vector<2x256xf32>,
    %c0_12 = arith.constant 0 : index
    %c15 = arith.constant 15 : index
    %30 = vector.load %arg5[%c0_12, %c15] : memref<2x288xf32, #tpu.memory_space<vmem>>, vector<2x256xf32>
    %c0_13 = arith.constant 0 : index
    %c17 = arith.constant 17 : index
    %31 = vector.load %arg5[%c0_13, %c17] : memref<2x288xf32, #tpu.memory_space<vmem>>, vector<2x256xf32>
    %cst_14 = arith.constant 0.000000e+00 : f32
    %32 = vector.shape_cast %22 : vector<1x256xi1> to vector<1x256xi1>
    %33 = vector.broadcast %32 : vector<1x256xi1> to vector<2x256xi1>
    %34 = vector.broadcast %cst_14 : f32 to vector<2x256xf32>
    %35 = arith.select %33, %30, %34 : vector<2x256xi1>, vector<2x256xf32>
    %36 = arith.addf %28, %35 : vector<2x256xf32>
    %cst_15 = arith.constant 0.000000e+00 : f32
    %37 = vector.shape_cast %24 : vector<1x256xi1> to vector<1x256xi1>
    %38 = vector.broadcast %37 : vector<1x256xi1> to vector<2x256xi1>
    %39 = vector.broadcast %cst_15 : f32 to vector<2x256xf32>
    %40 = arith.select %38, %31, %39 : vector<2x256xi1>, vector<2x256xf32>
    %41 = arith.addf %36, %40 : vector<2x256xf32>
    %c0_16 = arith.constant 0 : index
    %c16_17 = arith.constant 16 : index
    %42 = vector.load %arg5[%c0_16, %c16_17] : memref<2x288xf32, #tpu.memory_space<vmem>>, vector<2x256xf32>
    tpu.vector_store %arg5[%c0_16, %c16_17], %41 {strides = array<i32>} : memref<2x288xf32, #tpu.memory_space<vmem>>, vector<2x256xf32>,
    %c0_18 = arith.constant 0 : index
    %c0_19 = arith.constant 0 : index
    %43 = vector.load %arg5[%c0_18, %c0_19] : memref<2x288xf32, #tpu.memory_space<vmem>>, vector<2x256xf32>
    %c0_20 = arith.constant 0 : index
    %c32 = arith.constant 32 : index
    %44 = vector.load %arg5[%c0_20, %c32] : memref<2x288xf32, #tpu.memory_space<vmem>>, vector<2x256xf32>
    %45 = arith.addf %41, %43 : vector<2x256xf32>
    %46 = arith.addf %45, %44 : vector<2x256xf32>
    %47 = vector.broadcast %0 : f32 to vector<2x256xf32>
    %48 = arith.mulf %46, %47 : vector<2x256xf32>
    %49 = vector.broadcast %1 : f32 to vector<2x256xf32>
    %50 = arith.addf %48, %49 : vector<2x256xf32>
    %51 = arith.index_cast %26 : i32 to index
    %c0_21 = arith.constant 0 : index
    %52 = vector.load %arg4[%51, %c0_21] : memref<2x256xf32, #tpu.memory_space<vmem>>, vector<2x256xf32>
    tpu.vector_store %arg4[%51, %c0_21], %50 {strides = array<i32>} : memref<2x256xf32, #tpu.memory_space<vmem>>, vector<2x256xf32>,
    %c1_i32_22 = arith.constant 1 : i32
    return
  }
  func.func @transform_0(%arg0: i32) -> (i32, i32) {
    %c0_i32 = arith.constant 0 : i32
    %c0_i32_0 = arith.constant 0 : i32
    %c0_i32_1 = arith.constant 0 : i32
    return %c0_i32, %c0_i32_0 : i32, i32
  }
  func.func @transform_1(%arg0: i32) -> i32 {
    %c0_i32 = arith.constant 0 : i32
    %c0_i32_0 = arith.constant 0 : i32
    return %c0_i32 : i32
  }
  func.func @transform_2(%arg0: i32) -> (i32, i32) {
    %c0_i32 = arith.constant 0 : i32
    %c0_i32_0 = arith.constant 0 : i32
    return %arg0, %c0_i32 : i32, i32
  }
  func.func @transform_3(%arg0: i32) -> (i32, i32) {
    %c0_i32 = arith.constant 0 : i32
    %c0_i32_0 = arith.constant 0 : i32
    return %arg0, %c0_i32 : i32, i32
  }
}

</mosaic_0001>

<llo_original>
// kernel: tpu_custom_call.1
$region0: #{tpu_custom_call.1}
  #allocation0 [shape = 'u32[]', space=smem, size = 0x4, offset = 0x4, fixed_abs, tag = 'smem constant byte address 0x4 - core index']
  #allocation1 [shape = 'u32[144,128]{1,0:T(1,128)}', space=vmem, size = 0x12000, scoped, tag = 'internal scratch']
  #allocation2 [shape = 'f32[2,288]{1,0:T(2,128)}', space=vmem, size = 0xc00, scoped, tag = 'scratch operand']
  #allocation3 [shape = 'f32[1]{0:T(128)S(6)}', space=smem, size = 0x200, scoped, tag = 'scoped memory for tpu_custom_call.1']
  %s0 = inlined_call_operand.hbm [shape: f32[3,3], index: 0, kind: input, shape index: {}]
  %s1 = inlined_call_operand.<no memory space> [shape: f32[1], index: 1, kind: input, shape index: {}]
  %s2 = inlined_call_operand.vmem [shape: f32[2,256], index: 2, kind: input, shape index: {}]
  %s3 = inlined_call_operand.hbm [shape: f32[2,256], index: 3, kind: output, shape index: {}]
  %s4 = sld [smem:[#allocation0]]
  $region26: #{tpu_custom_call.1} parent=0
    _
  %s6 = ssub.s32 1, %s4
  %s7 = scalar_select 0, %s6, %s4
  %8 = sst [smem:[#allocation3]] %s1
  $region1: #{tpu_custom_call.1} parent=0
    #allocation4 [shape = 'u8[2048]{0}', space=smem, size = 0x800, scoped, tag = 'input window, operand 0, single buffered']
    #allocation5 [shape = 's32[1]{0}', space=sflag, size = 0x4, scoped, tag = 'scoped memory for tpu_custom_call.1']
    #allocation6 [shape = 's32[1]{0}', space=sflag, size = 0x4, scoped, tag = 'scoped memory for tpu_custom_call.1']
    #allocation7 [shape = 'u8[2048]{0}', space=vmem, size = 0x800, scoped, tag = 'output window, operand 0, single buffered']
    %9 = vsyncpa [#allocation6], 0
    %10 = vsyncpa [#allocation5], 0
    // Predicated region
    $region2: #{tpu_custom_call.1} parent=1 // pred_check
      _
    $region3: #{tpu_custom_call.1} parent=1 // pred_check_branch
      %12 = sbr.rel (0) target = $region5
    $region4: #{tpu_custom_call.1} parent=1 // pred_region
      %s14 = ssub.s32 64, 64
      %15 = vsyncadd [#allocation6], %s14
      %18 = dma.hbm_to_smem %s0, 64, [#allocation4], [#allocation6]
    $region5: #{tpu_custom_call.1} parent=1 // pred_fallthru
      _
    // Predicated region
    $region6: #{tpu_custom_call.1} parent=1 // pred_check
      _
    $region7: #{tpu_custom_call.1} parent=1 // pred_check_branch
      %20 = sbr.rel (0) target = $region9
    $region8: #{tpu_custom_call.1} parent=1 // pred_region
      _
    $region9: #{tpu_custom_call.1} parent=1 // pred_fallthru
      _
    // Predicated region
    $region10: #{tpu_custom_call.1} parent=1 // pred_check
      _
    $region11: #{tpu_custom_call.1} parent=1 // pred_check_branch
      %22 = sbr.rel (0) target = $region13
    $region12: #{tpu_custom_call.1} parent=1 // pred_region
      _
    $region13: #{tpu_custom_call.1} parent=1 // pred_fallthru
      _
    // Predicated region
    $region14: #{tpu_custom_call.1} parent=1 // pred_check
      _
    $region15: #{tpu_custom_call.1} parent=1 // pred_check_branch
      %24 = sbr.rel (0) target = $region17
    $region16: #{tpu_custom_call.1} parent=1 // pred_region
      %25 = dma.done [#allocation6], 64
    $region17: #{tpu_custom_call.1} parent=1 // pred_fallthru
      _
    %26 = sfence
    %s27 = sld [smem:[#allocation4]]
    %s28 = sld [smem:[#allocation3]]
    %vm29 = vcmask 1041408
    %vm30 = vcmask 1043458
    %vm31 = vmor %vm30, %vm29
    %vm32 = vcmask 259076
    %vm33 = vmor %vm32, %vm31
    %34 = vst.msk [vmem:[#allocation2] sm:$0x3f] %vm33, 0.0
    %v35 = vlaneseq
    %v36 = vand.u32 %v35, 127
    %v37 = vadd.s32 %v36, 128
    %vm38 = vcmp.lt.s32.totalorder %v36, 0
    %v39 = vsub.s32 0, %v36
    %v40 = vsel %vm38, %v39, %v36
    %v41 = vshrl.u32 %v40, 4
    %v42 = vand.u32 %v40, 15
    %v43 = vsub.s32 0, %v42
    %v44 = vsel %vm38, %v43, %v42
    %vm45 = vcmp.lt.s32.totalorder %v37, 0
    %v46 = vsub.s32 0, %v37
    %v47 = vsel %vm45, %v46, %v37
    %v48 = vshrl.u32 %v47, 4
    %v49 = vand.u32 %v47, 15
    %v50 = vsub.s32 0, %v49
    %v51 = vsel %vm45, %v50, %v49
    %vm52 = vcmp.ne.s32.totalorder %v44, 0
    %vm53 = vcmp.ne.s32.totalorder %v51, 0
    %vm54 = vcmp.lt.s32.totalorder %v44, 0
    %vm55 = vcmp.lt.s32.totalorder %v51, 0
    %vm56 = vmand %vm54, %vm52
    %vm57 = vmand %vm55, %vm53
    %v58 = vadd.s32 %v44, 16
    %v59 = vadd.s32 %v51, 16
    %v60 = vsel %vm56, %v58, %v44
    %v61 = vsel %vm57, %v59, %v51
    %vm62 = vcmp.gt.s32.totalorder %v60, 0
    %vm63 = vcmp.gt.s32.totalorder %v61, 0
    %vm64 = vcmp.lt.s32.totalorder %v60, 15
    %vm65 = vcmp.lt.s32.totalorder %v61, 15
    %v66 = vld [vmem:[%s2] sm:$0xf]
    %68 = vrot.lane.b32.xlu0 %v66, 16
    %v69 = vpop.permute.xlu0 %68
    %v70 = vrot.slane %v69, 6
    %vm71 = vcmask 130048
    %v72 = vsel %vm71, %v70, %v69
    %vm74 = vcmask 1041536
    %vm75 = vmor %vm30, %vm74
    %vm76 = vcmask 128004
    %vm77 = vmor %vm76, %vm75
    %78 = vst.msk [vmem:[#allocation2] sm:$0x3f] %vm77, %v72
    %v79 = vld [vmem:[#allocation2] sm:$0x3f]
    %v80 = vsel %vm62, 1, 0
    %v81 = vsel %vm63, 1, 0
    %vm82 = vcmp.eq.s32.totalorder %v80, 1
    %vm83 = vcmp.eq.s32.totalorder %v81, 1
    %v85 = vcombine.high %v79, %v79
    %v87 = vunpack.c.l.s4 1983009808
    %v88 = vunpack.c.0.s8 %v87
    %v89 = vlaneseq
    %v90 = vshrl.u32 %v89, 7
    %v91 = vsub.s32 %v88, %v90
    %v92 = vrot.slane %v79, %v91
    %v94 = vunpack.c.l.s4 1983009808
    %v95 = vunpack.c.0.s8 %v94
    %v96 = vlaneseq
    %v97 = vshrl.u32 %v96, 7
    %v98 = vsub.s32 %v95, %v97
    %v99 = vrot.slane %v85, %v98
    %v100 = vcombine.high %v92, %v92
    %101 = vrot.lane.b32.xlu0 %v92, 113
    %v102 = vpop.permute.xlu0 %101
    %103 = vrot.lane.b32.xlu0 %v100, 113
    %v104 = vpop.permute.xlu0 %103
    %105 = vrot.lane.b32.xlu0 %v99, 113
    %v106 = vpop.permute.xlu0 %105
    %vm107 = vcmask 924672
    %v108 = vsel %vm107, %v102, %v104
    %v109 = vsel %vm107, %v104, %v106
    %v112 = vsel %vm82, %v108, 0.0
    %v113 = vsel %vm83, %v109, 0.0
    %v116 = vcombine.low %v112, %v113
    %v118 = vunpack.c.l.s4 1983009808
    %v119 = vunpack.c.0.s8 %v118
    %v120 = vlaneseq
    %v121 = vshrl.u32 %v120, 7
    %v122 = vsub.s32 %v119, %v121
    %v123 = vrot.slane %v116, %v122
    %v125 = vadd.f32 %v66, %v123
    %v126 = vsel %vm64, 1, 0
    %v127 = vsel %vm65, 1, 0
    %vm128 = vcmp.eq.s32.totalorder %v126, 1
    %vm129 = vcmp.eq.s32.totalorder %v127, 1
    %130 = vrot.lane.b32.xlu0 %v92, 111
    %v131 = vpop.permute.xlu0 %130
    %132 = vrot.lane.b32.xlu0 %v100, 111
    %v133 = vpop.permute.xlu0 %132
    %134 = vrot.lane.b32.xlu0 %v99, 111
    %v135 = vpop.permute.xlu0 %134
    %vm136 = vcmask 908288
    %v137 = vsel %vm136, %v131, %v133
    %v138 = vsel %vm136, %v133, %v135
    %v141 = vsel %vm128, %v137, 0.0
    %v142 = vsel %vm129, %v138, 0.0
    %v145 = vcombine.low %v141, %v142
    %v147 = vunpack.c.l.s4 1983009808
    %v148 = vunpack.c.0.s8 %v147
    %v149 = vlaneseq
    %v150 = vshrl.u32 %v149, 7
    %v151 = vsub.s32 %v148, %v150
    %v152 = vrot.slane %v145, %v151
    %v154 = vadd.f32 %v125, %v152
    %156 = vrot.lane.b32.xlu0 %v154, 16
    %v157 = vpop.permute.xlu0 %156
    %v158 = vrot.slane %v157, 6
    %v159 = vsel %vm71, %v158, %v157
    %161 = vst.msk [vmem:[#allocation2] sm:$0x3f] %vm77, %v159
    %v162 = vld [vmem:[#allocation2] sm:$0xf]
    %v163 = vld [vmem:[#allocation2] sm:$0x3f]
    %v164 = vadd.f32 %v154, %v162
    %166 = vrot.lane.b32.xlu0 %v163, 96
    %v167 = vpop.permute.xlu0 %166
    %v168 = vrot.slane %v167, 2
    %vm169 = vcmask 785408
    %v170 = vsel %vm169, %v167, %v168
    %v172 = vadd.f32 %v164, %v170
    %v173 = vstv %s27
    %v174 = vmul.f32 %v172, %v173
    %v175 = vstv %s28
    %v176 = vadd.f32 %v174, %v175
    %177 = vst [vmem:[#allocation7] sm:$0xf] %v176
    // Predicated region
    $region18: #{tpu_custom_call.1} parent=1 // pred_check
      _
    $region19: #{tpu_custom_call.1} parent=1 // pred_check_branch
      %179 = sbr.rel (0) target = $region21
    $region20: #{tpu_custom_call.1} parent=1 // pred_region
      %s181 = ssub.s32 64, 64
      %182 = vsyncadd [#allocation5], %s181
      %s184 = sshll.u32 [#allocation7], 4
      %s185 = int_to_ptr.vmem [resolvable:$true] %s184
      %187 = dma.vmem_to_hbm [thread:$0]  %s185, 64, %s3, [#allocation5]
    $region21: #{tpu_custom_call.1} parent=1 // pred_fallthru
      _
    // Predicated region
    $region22: #{tpu_custom_call.1} parent=1 // pred_check
      _
    $region23: #{tpu_custom_call.1} parent=1 // pred_check_branch
      %189 = sbr.rel (0) target = $region25
    $region24: #{tpu_custom_call.1} parent=1 // pred_region
      %190 = dma.done [#allocation5], 64
    $region25: #{tpu_custom_call.1} parent=1 // pred_fallthru
      _
    %191 = vsyncpa [#allocation5], 1
    %192 = vsyncpa [#allocation6], 1

</llo_original>
